<compile_context>
chip_gen: v6e
topology: v6e:2x2x1
jax: 0.10.0
libtpu: 0.0.40
codegen_flags: <defaults>
</compile_context>

<pallas_src>
import functools
import math

import jax
import jax.numpy as jnp
from jax import lax
from jax.experimental import pallas as pl
from jax.experimental.pallas import tpu as pltpu


def _round_up(x, m):
    return (x + m - 1) // m * m


def _vmem_limit_bytes():
    """Generation-aware VMEM budget (v7x: 64 MiB/TC; v5e/v6e: 128 MiB)."""
    cap = 64 * 1024 * 1024  # conservative default
    try:
        cap = int(getattr(pltpu.get_tpu_info(), "vmem_capacity_bytes", cap))
    except Exception:
        pass
    return max(16 * 1024 * 1024, min(cap // 2, 64 * 1024 * 1024))


def _mxu_is_128_wide():
    """True on v4 / v5e (128-wide MXU) -> prefer 128-wide kv chunks."""
    try:
        kind = jax.devices()[0].device_kind.lower()
        return ("v4" in kind) or ("v5e" in kind) or ("v5 lite" in kind)
    except Exception:
        return False


# --------------------------- Linear: y = x @ W + b ---------------------------

def _linear_kernel(x_ref, w_ref, b_ref, o_ref, acc_ref):
    k = pl.program_id(2)

    @pl.when(k == 0)
    def _():
        acc_ref[...] = jnp.zeros_like(acc_ref)

    acc_ref[...] += jnp.dot(x_ref[...], w_ref[...],
                            preferred_element_type=jnp.float32)

    @pl.when(k == pl.num_programs(2) - 1)
    def _():
        o_ref[...] = (acc_ref[...] + b_ref[...]).astype(o_ref.dtype)


def linear_pallas(x, w, b, *, tm=256, tn=512, tk=512, out_dtype=jnp.bfloat16):
    """x: (M, K), w: (K, N), b: (N,)  ->  (M, N) out_dtype (bf16 MXU, f32 acc)."""
    M, K = x.shape
    N = w.shape[1]

    tm = min(tm, _round_up(M, 8))
    tn = min(tn, _round_up(N, 128))
    tk = min(tk, _round_up(K, 128))
    Mp, Kp, Np = _round_up(M, tm), _round_up(K, tk), _round_up(N, tn)

    xp = x.astype(jnp.bfloat16)
    if (Mp, Kp) != (M, K):
        xp = jnp.pad(xp, ((0, Mp - M), (0, Kp - K)))
    wp = w.astype(jnp.bfloat16)
    if (Kp, Np) != (K, N):
        wp = jnp.pad(wp, ((0, Kp - K), (0, Np - N)))
    bp = b.astype(jnp.float32).reshape(1, N)
    if Np != N:
        bp = jnp.pad(bp, ((0, 0), (0, Np - N)))

    out = pl.pallas_call(
        _linear_kernel,
        out_shape=jax.ShapeDtypeStruct((Mp, Np), out_dtype),
        grid_spec=pltpu.PrefetchScalarGridSpec(
            num_scalar_prefetch=0,
            grid=(Mp // tm, Np // tn, Kp // tk),
            in_specs=[
                pl.BlockSpec((tm, tk), lambda i, j, k: (i, k)),   # x tile
                pl.BlockSpec((tk, tn), lambda i, j, k: (k, j)),   # W tile (streamed)
                pl.BlockSpec((1, tn), lambda i, j, k: (0, j)),    # bias row
            ],
            out_specs=pl.BlockSpec((tm, tn), lambda i, j, k: (i, j)),
            scratch_shapes=[pltpu.VMEM((tm, tn), jnp.float32)],
        ),
        compiler_params=pltpu.CompilerParams(
            dimension_semantics=("parallel", "parallel", "arbitrary"),
            vmem_limit_bytes=_vmem_limit_bytes(),
        ),
    )(xp, wp, bp)

    if (Mp, Np) != (M, N):
        out = out[:M, :N]
    return out


# ------------------ Flash attention (resident K/V per head) ------------------

def _flash_kernel(q_ref, k_ref, v_ref, o_ref, *, seq_len, tq, tkv, n_kv, causal):
    # q_ref: (1, tq, hd) bf16; k_ref/v_ref: (1, Tp, hd) bf16 (resident per head).
    qi = pl.program_id(1)
    q = q_ref[0]                                  # (tq, hd), loaded/cast once
    hd = q.shape[-1]
    pad = (n_kv * tkv) != seq_len                 # padded keys present?

    def body(c, carry):
        m_prev, l_prev, acc_prev = carry
        kv_start = pl.multiple_of(c * tkv, tkv)
        kb = k_ref[0, pl.ds(kv_start, tkv), :]    # (tkv, hd) bf16
        vb = v_ref[0, pl.ds(kv_start, tkv), :]
        # scale is pre-folded into q via the c_attn weights
        s = lax.dot_general(q, kb, (((1,), (1,)), ((), ())),
                            preferred_element_type=jnp.float32)   # (tq, tkv)

        if causal or pad:
            col = kv_start + lax.broadcasted_iota(jnp.int32, s.shape, 1)
            ok = None
            if pad:
                ok = col < seq_len
            if causal:
                row = qi * tq + lax.broadcasted_iota(jnp.int32, s.shape, 0)
                cm = row >= col
                ok = cm if ok is None else jnp.logical_and(ok, cm)
            s = jnp.where(ok, s, -1e30)

        m_cur = s.max(axis=-1, keepdims=True)
        m_new = jnp.maximum(m_prev, m_cur)
        alpha = jnp.exp(m_prev - m_new)
        p = jnp.exp(s - m_new)
        l_new = alpha * l_prev + p.sum(axis=-1, keepdims=True)
        acc_new = alpha * acc_prev + lax.dot_general(
            p.astype(jnp.bfloat16), vb, (((1,), (0,)), ((), ())),
            preferred_element_type=jnp.float32)
        return m_new, l_new, acc_new

    m0 = jnp.full((tq, 1), -1e30, dtype=jnp.float32)
    l0 = jnp.zeros((tq, 1), dtype=jnp.float32)
    a0 = jnp.zeros((tq, hd), dtype=jnp.float32)

    if causal:
        # Skip kv chunks that lie entirely above the diagonal for this q tile.
        hi = jnp.minimum((qi * tq + tq + tkv - 1) // tkv, n_kv)
        m, l, acc = lax.fori_loop(0, hi, body, (m0, l0, a0))
    else:
        m, l, acc = lax.fori_loop(0, n_kv, body, (m0, l0, a0),
                                  unroll=(n_kv <= 8))

    o_ref[0] = (acc * pl.reciprocal(l, approx=True)).astype(o_ref.dtype)


def flash_attention_pallas(q, k, v, *, causal=False, tq=None, tkv=None):
    """q, k, v: (B*H, T, hd) -> (B*H, T, hd) bf16. Scale must be pre-folded into q."""
    BH, T, hd = q.shape

    if tq is None:
        tq = 128 if T > 128 else _round_up(T, 8)
    Tp = _round_up(T, tq)
    if tkv is None:
        pref = 128 if _mxu_is_128_wide() else 256
        if Tp % pref == 0:
            tkv = pref
        elif Tp % 128 == 0:
            tkv = 128
        else:
            tkv = Tp                       # single-chunk case (T <= 128)
    assert Tp % tq == 0 and Tp % tkv == 0
    n_kv = Tp // tkv

    q = q.astype(jnp.bfloat16)
    k = k.astype(jnp.bfloat16)
    v = v.astype(jnp.bfloat16)
    if Tp != T:
        padw = ((0, 0), (0, Tp - T), (0, 0))
        q, k, v = jnp.pad(q, padw), jnp.pad(k, padw), jnp.pad(v, padw)

    kernel = functools.partial(_flash_kernel, seq_len=T, tq=tq, tkv=tkv,
                               n_kv=n_kv, causal=causal)
    out = pl.pallas_call(
        kernel,
        out_shape=jax.ShapeDtypeStruct((BH, Tp, hd), jnp.bfloat16),
        grid_spec=pltpu.PrefetchScalarGridSpec(
            num_scalar_prefetch=0,
            grid=(BH, Tp // tq),
            in_specs=[
                pl.BlockSpec((1, tq, hd), lambda b, qi: (b, qi, 0)),   # q tile
                pl.BlockSpec((1, Tp, hd), lambda b, qi: (b, 0, 0)),    # K resident
                pl.BlockSpec((1, Tp, hd), lambda b, qi: (b, 0, 0)),    # V resident
            ],
            out_specs=pl.BlockSpec((1, tq, hd), lambda b, qi: (b, qi, 0)),
        ),
        compiler_params=pltpu.CompilerParams(
            dimension_semantics=("parallel", "parallel"),
            vmem_limit_bytes=_vmem_limit_bytes(),
        ),
    )(q, k, v)

    return out[:, :T, :] if Tp != T else out


# ----------------------------- Full module forward ---------------------------

def causal_self_attention_pallas(x, w_attn, b_attn, w_proj, b_proj, n_head,
                                 *, causal=False):
    """x: (B, T, C); w_attn: (C, 3C); b_attn: (3C,); w_proj: (C, C); b_proj: (C,)."""
    B, T, C = x.shape
    assert C % n_head == 0
    hd = C // n_head

    # Fold 1/sqrt(hd) into the Q projection: removes the per-kv-step score scale.
    scale = 1.0 / math.sqrt(hd)
    w_attn_s = w_attn.at[:, :C].multiply(scale)
    b_attn_s = b_attn.at[:C].multiply(scale)

    x2d = x.reshape(B * T, C)
    qkv = linear_pallas(x2d, w_attn_s, b_attn_s)              # (B*T, 3C) bf16
    qkv = qkv.reshape(B, T, 3, n_head, hd)
    # Head split/merge: lane-dense bf16 XLA copies (see module docstring).
    q = qkv[:, :, 0].transpose(0, 2, 1, 3).reshape(B * n_head, T, hd)
    k = qkv[:, :, 1].transpose(0, 2, 1, 3).reshape(B * n_head, T, hd)
    v = qkv[:, :, 2].transpose(0, 2, 1, 3).reshape(B * n_head, T, hd)

    y = flash_attention_pallas(q, k, v, causal=causal)        # (B*H, T, hd) bf16
    y = y.reshape(B, n_head, T, hd).transpose(0, 2, 1, 3).reshape(B * T, C)

    out = linear_pallas(y, w_proj, b_proj, out_dtype=x.dtype)  # final in x dtype
    return out.reshape(B, T, C)


# --------------------------------- Reference ----------------------------------

def causal_self_attention_reference(x, w_attn, b_attn, w_proj, b_proj, n_head,
                                    *, causal=False):
    B, T, C = x.shape
    hd = C // n_head
    qkv = x @ w_attn + b_attn
    q, k, v = jnp.split(qkv, 3, axis=-1)

    def heads(t):
        return t.reshape(B, T, n_head, hd).transpose(0, 2, 1, 3)

    q, k, v = heads(q), heads(k), heads(v)
    s = jnp.einsum("bhqd,bhkd->bhqk", q, k) / math.sqrt(hd)
    if causal:
        mask = jnp.tril(jnp.ones((T, T), dtype=bool))
        s = jnp.where(mask, s, -jnp.inf)
    p = jax.nn.softmax(s, axis=-1)
    y = jnp.einsum("bhqk,bhkd->bhqd", p, v)
    y = y.transpose(0, 2, 1, 3).reshape(B, T, C)
    return y @ w_proj + b_proj


if __name__ == "__main__":
    # model_config: n_embd=32, n_head=4 (head_dim=8); batch=2, seq=8
    n_embd, n_head = 32, 4
    B, T = 2, 8

    key = jax.random.PRNGKey(0)
    kx, k1, k2, k3, k4 = jax.random.split(key, 5)

    x = jax.random.normal(kx, (B, T, n_embd), dtype=jnp.float32)
    w_attn = jax.random.normal(k1, (n_embd, 3 * n_embd), jnp.float32) / math.sqrt(n_embd)
    b_attn = jax.random.normal(k2, (3 * n_embd,), jnp.float32) * 0.02
    w_proj = jax.random.normal(k3, (n_embd, n_embd), jnp.float32) / math.sqrt(n_embd)
    b_proj = jax.random.normal(k4, (n_embd,), jnp.float32) * 0.02

    out = causal_self_attention_pallas(x, w_attn, b_attn, w_proj, b_proj, n_head)
    jax.block_until_ready(out)

    ref = causal_self_attention_reference(x, w_attn, b_attn, w_proj, b_proj, n_head)
    # bf16 activation path with f32 accumulation => loose tolerance vs f32 ref.
    assert jnp.allclose(out, ref, atol=1e-1, rtol=1e-1), "mismatch vs reference"

    print("KERNEL_OK")
</pallas_src>

<mosaic_0001>
module attributes {stable_mosaic.version = 11 : i64} {
  func.func @_linear_kernel(%arg0: i32, %arg1: i32, %arg2: i32, %arg3: memref<16x128xbf16, #tpu.memory_space<vmem>>, %arg4: memref<128x128xbf16, #tpu.memory_space<vmem>>, %arg5: memref<1x128xf32, #tpu.memory_space<vmem>>, %arg6: memref<16x128xbf16, #tpu.memory_space<vmem>>, %arg7: memref<16x128xf32, #tpu.memory_space<vmem>>) attributes {dimension_semantics = [#tpu.dimension_semantics<parallel>, #tpu.dimension_semantics<parallel>, #tpu.dimension_semantics<arbitrary>], iteration_bounds = array<i64: 1, 1, 1>, scalar_prefetch = 0 : i64, scratch_operands = 1 : i64, tpu.core_type = #tpu.core_type<tc>, window_params = [{transform_indices = @transform_0, window_bounds = array<i64: 16, 128>}, {transform_indices = @transform_1, window_bounds = array<i64: 128, 128>}, {transform_indices = @transform_2, window_bounds = array<i64: 1, 128>}, {transform_indices = @transform_3, window_bounds = array<i64: 16, 128>}]} {
    %c0_i32 = arith.constant 0 : i32
    %0 = arith.cmpi eq, %arg2, %c0_i32 : i32
    %1 = arith.extui %0 : i1 to i32
    %c0_i32_0 = arith.constant 0 : i32
    %2 = arith.cmpi ne, %1, %c0_i32_0 : i32
    scf.if %2 {
      %cst_10 = arith.constant 0.000000e+00 : f32
      %12 = vector.broadcast %cst_10 : f32 to vector<16x128xf32>
      %c0_11 = arith.constant 0 : index
      %c0_12 = arith.constant 0 : index
      %13 = vector.load %arg7[%c0_11, %c0_12] : memref<16x128xf32, #tpu.memory_space<vmem>>, vector<16x128xf32>
      tpu.vector_store %arg7[%c0_11, %c0_12], %12 {strides = array<i32>} : memref<16x128xf32, #tpu.memory_space<vmem>>, vector<16x128xf32>,
    } else {
    }
    %c0 = arith.constant 0 : index
    %c0_1 = arith.constant 0 : index
    %3 = vector.load %arg7[%c0, %c0_1] : memref<16x128xf32, #tpu.memory_space<vmem>>, vector<16x128xf32>
    %c0_2 = arith.constant 0 : index
    %c0_3 = arith.constant 0 : index
    %4 = vector.load %arg3[%c0_2, %c0_3] : memref<16x128xbf16, #tpu.memory_space<vmem>>, vector<16x128xbf16>
    %c0_4 = arith.constant 0 : index
    %c0_5 = arith.constant 0 : index
    %5 = vector.load %arg4[%c0_4, %c0_5] : memref<128x128xbf16, #tpu.memory_space<vmem>>, vector<128x128xbf16>
    %cst = arith.constant dense<0.000000e+00> : vector<16x128xf32>
    %6 = tpu.matmul %4, %5, %cst {dimension_numbers = #tpu.dot_dimension_numbers<[1], [0], [0], [1], [0, 0, 1, 1], [], []>} : vector<16x128xbf16>, vector<128x128xbf16>, vector<16x128xf32> -> vector<16x128xf32>
    %7 = arith.addf %3, %6 : vector<16x128xf32>
    %c0_6 = arith.constant 0 : index
    %c0_7 = arith.constant 0 : index
    %8 = vector.load %arg7[%c0_6, %c0_7] : memref<16x128xf32, #tpu.memory_space<vmem>>, vector<16x128xf32>
    tpu.vector_store %arg7[%c0_6, %c0_7], %7 {strides = array<i32>} : memref<16x128xf32, #tpu.memory_space<vmem>>, vector<16x128xf32>,
    %c0_i32_8 = arith.constant 0 : i32
    %9 = arith.cmpi eq, %arg2, %c0_i32_8 : i32
    %10 = arith.extui %9 : i1 to i32
    %c0_i32_9 = arith.constant 0 : i32
    %11 = arith.cmpi ne, %10, %c0_i32_9 : i32
    scf.if %11 {
      %c0_10 = arith.constant 0 : index
      %c0_11 = arith.constant 0 : index
      %12 = vector.load %arg7[%c0_10, %c0_11] : memref<16x128xf32, #tpu.memory_space<vmem>>, vector<16x128xf32>
      %c0_12 = arith.constant 0 : index
      %c0_13 = arith.constant 0 : index
      %13 = vector.load %arg5[%c0_12, %c0_13] : memref<1x128xf32, #tpu.memory_space<vmem>>, vector<1x128xf32>
      %14 = vector.broadcast %13 : vector<1x128xf32> to vector<16x128xf32>
      %15 = arith.addf %12, %14 : vector<16x128xf32>
      %16 = arith.truncf %15 : vector<16x128xf32> to vector<16x128xbf16>
      %c0_14 = arith.constant 0 : index
      %c0_15 = arith.constant 0 : index
      %17 = vector.load %arg6[%c0_14, %c0_15] : memref<16x128xbf16, #tpu.memory_space<vmem>>, vector<16x128xbf16>
      tpu.vector_store %arg6[%c0_14, %c0_15], %16 {strides = array<i32>} : memref<16x128xbf16, #tpu.memory_space<vmem>>, vector<16x128xbf16>,
    } else {
    }
    return
  }
  func.func @transform_0(%arg0: i32, %arg1: i32, %arg2: i32) -> (i32, i32) {
    %c0_i32 = arith.constant 0 : i32
    return %arg0, %arg2 : i32, i32
  }
  func.func @transform_1(%arg0: i32, %arg1: i32, %arg2: i32) -> (i32, i32) {
    %c0_i32 = arith.constant 0 : i32
    return %arg2, %arg1 : i32, i32
  }
  func.func @transform_2(%arg0: i32, %arg1: i32, %arg2: i32) -> (i32, i32) {
    %c0_i32 = arith.constant 0 : i32
    %c0_i32_0 = arith.constant 0 : i32
    return %c0_i32, %arg1 : i32, i32
  }
  func.func @transform_3(%arg0: i32, %arg1: i32, %arg2: i32) -> (i32, i32) {
    %c0_i32 = arith.constant 0 : i32
    return %arg0, %arg1 : i32, i32
  }
}

</mosaic_0001>

<llo_original>
// kernel: tpu_custom_call.1
$region0: #{tpu_custom_call.1}
  #allocation0 [shape = 'u32[]', space=smem, size = 0x4, offset = 0x4, fixed_abs, tag = 'smem constant byte address 0x4 - core index']
  #allocation1 [shape = 'u32[144,128]{1,0:T(1,128)}', space=vmem, size = 0x12000, scoped, tag = 'internal scratch']
  #allocation2 [shape = 'f32[16,128]{1,0:T(8,128)}', space=vmem, size = 0x2000, scoped, tag = 'scratch operand']
  %s0 = inlined_call_operand.hbm [shape: bf16[16,128], index: 0, kind: input, shape index: {}]
  %s1 = inlined_call_operand.hbm [shape: bf16[128,128], index: 1, kind: input, shape index: {}]
  %s2 = inlined_call_operand.vmem [shape: f32[1,128], index: 2, kind: input, shape index: {}]
  %s3 = inlined_call_operand.hbm [shape: bf16[16,128], index: 3, kind: output, shape index: {}]
  %s4 = sld [smem:[#allocation0]]
  $region38: #{tpu_custom_call.1} parent=0
    _
  %s6 = ssub.s32 1, %s4
  %s7 = scalar_select 0, %s6, %s4
  $region1: #{tpu_custom_call.1} parent=0
    #allocation3 [shape = 'u8[4096]{0}', space=vmem, size = 0x1000, scoped, tag = 'input window, operand 0, single buffered']
    #allocation4 [shape = 's32[1]{0}', space=sflag, size = 0x4, scoped, tag = 'scoped memory for tpu_custom_call.1']
    #allocation5 [shape = 's32[1]{0}', space=sflag, size = 0x4, scoped, tag = 'scoped memory for tpu_custom_call.1']
    #allocation6 [shape = 'u8[32768]{0}', space=vmem, size = 0x8000, scoped, tag = 'input window, operand 1, single buffered']
    #allocation7 [shape = 's32[1]{0}', space=sflag, size = 0x4, scoped, tag = 'scoped memory for tpu_custom_call.1']
    #allocation8 [shape = 'u8[4096]{0}', space=vmem, size = 0x1000, scoped, tag = 'output window, operand 0, single buffered']
    %8 = vsyncpa [#allocation4], 0
    %9 = vsyncpa [#allocation7], 0
    %10 = vsyncpa [#allocation5], 0
    // Predicated region
    $region2: #{tpu_custom_call.1} parent=1 // pred_check
      _
    $region3: #{tpu_custom_call.1} parent=1 // pred_check_branch
      %12 = sbr.rel (0) target = $region5
    $region4: #{tpu_custom_call.1} parent=1 // pred_region
      %s14 = ssub.s32 128, 128
      %15 = vsyncadd [#allocation4], %s14
      %s16 = sshll.u32 [#allocation3], 4
      %s17 = int_to_ptr.vmem [resolvable:$true] %s16
      %22 = dma.hbm_to_vmem [thread:$0]  %s0, 128, %s17, [#allocation4], 64, 64, 4
    $region5: #{tpu_custom_call.1} parent=1 // pred_fallthru
      _
    // Predicated region
    $region6: #{tpu_custom_call.1} parent=1 // pred_check
      _
    $region7: #{tpu_custom_call.1} parent=1 // pred_check_branch
      %24 = sbr.rel (0) target = $region9
    $region8: #{tpu_custom_call.1} parent=1 // pred_region
      %s26 = ssub.s32 1024, 1024
      %27 = vsyncadd [#allocation7], %s26
      %s28 = sshll.u32 [#allocation6], 4
      %s29 = int_to_ptr.vmem [resolvable:$true] %s28
      %34 = dma.hbm_to_vmem [thread:$0]  %s1, 1024, %s29, [#allocation7], 64, 64, 4
    $region9: #{tpu_custom_call.1} parent=1 // pred_fallthru
      _
    // Predicated region
    $region10: #{tpu_custom_call.1} parent=1 // pred_check
      _
    $region11: #{tpu_custom_call.1} parent=1 // pred_check_branch
      %36 = sbr.rel (0) target = $region13
    $region12: #{tpu_custom_call.1} parent=1 // pred_region
      _
    $region13: #{tpu_custom_call.1} parent=1 // pred_fallthru
      _
    // Predicated region
    $region14: #{tpu_custom_call.1} parent=1 // pred_check
      _
    $region15: #{tpu_custom_call.1} parent=1 // pred_check_branch
      %38 = sbr.rel (0) target = $region17
    $region16: #{tpu_custom_call.1} parent=1 // pred_region
      %39 = dma.done [#allocation4], 128
    $region17: #{tpu_custom_call.1} parent=1 // pred_fallthru
      _
    // Predicated region
    $region18: #{tpu_custom_call.1} parent=1 // pred_check
      _
    $region19: #{tpu_custom_call.1} parent=1 // pred_check_branch
      %41 = sbr.rel (0) target = $region21
    $region20: #{tpu_custom_call.1} parent=1 // pred_region
      %42 = dma.done [#allocation7], 1024
    $region21: #{tpu_custom_call.1} parent=1 // pred_fallthru
      _
    %p44 = scmp.eq.s32.totalorder 0, 0
    // Predicated region
    $region22: #{tpu_custom_call.1} parent=1 // pred_check
      %p45 = pneg %p44
    $region23: #{tpu_custom_call.1} parent=1 // pred_check_branch
      %47 = sbr.rel (%p45) target = $region25
    $region24: #{tpu_custom_call.1} parent=1 // pred_region
      %48 = vst [vmem:[#allocation2] sm:$0xff] 0.0
      %49 = vst [vmem:[#allocation2 + $0x8] sm:$0xff] 0.0
    $region25: #{tpu_custom_call.1} parent=1 // pred_fallthru
      _
    %v50 = vld [vmem:[#allocation2] sm:$0xff]
    %v51 = vld [vmem:[#allocation2 + $0x8] sm:$0xff]
    %v52 = vld [vmem:[#allocation3] sm:$0xf]
    %v53 = vld [vmem:[#allocation3 + $0x4] sm:$0xf]
    %v54 = vld [vmem:[#allocation6] sm:$0xf]
    %v55 = vld [vmem:[#allocation6 + $0x4] sm:$0xf]
    %v56 = vld [vmem:[#allocation6 + $0x8] sm:$0xf]
    %v57 = vld [vmem:[#allocation6 + $0xc] sm:$0xf]
    %v58 = vld [vmem:[#allocation6 + $0x10] sm:$0xf]
    %v59 = vld [vmem:[#allocation6 + $0x14] sm:$0xf]
    %v60 = vld [vmem:[#allocation6 + $0x18] sm:$0xf]
    %v61 = vld [vmem:[#allocation6 + $0x1c] sm:$0xf]
    %v62 = vld [vmem:[#allocation6 + $0x20] sm:$0xf]
    %v63 = vld [vmem:[#allocation6 + $0x24] sm:$0xf]
    %v64 = vld [vmem:[#allocation6 + $0x28] sm:$0xf]
    %v65 = vld [vmem:[#allocation6 + $0x2c] sm:$0xf]
    %v66 = vld [vmem:[#allocation6 + $0x30] sm:$0xf]
    %v67 = vld [vmem:[#allocation6 + $0x34] sm:$0xf]
    %v68 = vld [vmem:[#allocation6 + $0x38] sm:$0xf]
    %v69 = vld [vmem:[#allocation6 + $0x3c] sm:$0xf]
    %v72 = vunpack.c.l.b16 %v52
    %v73 = vunpack.c.l.b16 %v53
    %v74 = vpack.c.b16 %v73, %v72
    %v92 = vunpack.c.l.b16 %v54
    %v93 = vunpack.c.l.b16 %v55
    %v94 = vunpack.c.l.b16 %v56
    %v95 = vunpack.c.l.b16 %v57
    %v96 = vunpack.c.l.b16 %v58
    %v97 = vunpack.c.l.b16 %v59
    %v98 = vunpack.c.l.b16 %v60
    %v99 = vunpack.c.l.b16 %v61
    %v100 = vunpack.c.l.b16 %v62
    %v101 = vunpack.c.l.b16 %v63
    %v102 = vunpack.c.l.b16 %v64
    %v103 = vunpack.c.l.b16 %v65
    %v104 = vunpack.c.l.b16 %v66
    %v105 = vunpack.c.l.b16 %v67
    %v106 = vunpack.c.l.b16 %v68
    %v107 = vunpack.c.l.b16 %v69
    %v108 = vpack.c.b16 %v93, %v92
    %v109 = vpack.c.b16 %v95, %v94
    %v110 = vpack.c.b16 %v97, %v96
    %v111 = vpack.c.b16 %v99, %v98
    %v112 = vpack.c.b16 %v101, %v100
    %v113 = vpack.c.b16 %v103, %v102
    %v114 = vpack.c.b16 %v105, %v104
    %v115 = vpack.c.b16 %v107, %v106
    %124 = vmatprep.subr.bf16.mxu0 0
    %125 = vmatpush1.bf16.msra.mxu0 %v115
    %126 = vmatprep.subr.bf16.mxu0 0
    %127 = vmatpush1.bf16.msra.mxu0 %v114
    %128 = vmatprep.subr.bf16.mxu0 0
    %129 = vmatpush1.bf16.msra.mxu0 %v113
    %130 = vmatprep.subr.bf16.mxu0 0
    %131 = vmatpush1.bf16.msra.mxu0 %v112
    %132 = vmatprep.subr.bf16.mxu0 0
    %133 = vmatpush1.bf16.msra.mxu0 %v111
    %134 = vmatprep.subr.bf16.mxu0 0
    %135 = vmatpush1.bf16.msra.mxu0 %v110
    %136 = vmatprep.subr.bf16.mxu0 0
    %137 = vmatpush1.bf16.msra.mxu0 %v109
    %138 = vmatprep.subr.bf16.mxu0 0
    %139 = vmatpush1.bf16.msra.mxu0 %v108
    %140 = vmatprep.subr.bf16.mxu0 0
    %141 = vmatpush2.bf16.msra.mxu0 0
    %142 = vmatprep.subr.bf16.mxu0 0
    %143 = vmatpush2.bf16.msra.mxu0 0
    %144 = vmatprep.subr.bf16.mxu0 0
    %145 = vmatpush2.bf16.msra.mxu0 0
    %146 = vmatprep.subr.bf16.mxu0 0
    %147 = vmatpush2.bf16.msra.mxu0 0
    %148 = vmatprep.subr.bf16.mxu0 0
    %149 = vmatpush2.bf16.msra.mxu0 0
    %150 = vmatprep.subr.bf16.mxu0 0
    %151 = vmatpush2.bf16.msra.mxu0 0
    %152 = vmatprep.subr.bf16.mxu0 0
    %153 = vmatpush2.bf16.msra.mxu0 0
    %154 = vmatprep.subr.bf16.mxu0 0
    %155 = vmatpush2.bf16.msra.mxu0 0
    %156 = vmatprep.mubr.bf16.mxu0 0
    %157 = vmatmul.mubr.bf16.gmra.mxu0 %v74
    %v158 = vpop.f32.mrf.mxu0
    %v159 = vadd.f32 0.0, %v158
    %v160 = vpop.f32.mrf.mxu0
    %v161 = vpop.f32.mrf.mxu0
    %v162 = vadd.f32 0.0, %v161
    %v163 = vpop.f32.mrf.mxu0
    %164 = vdwg.mxu0
    %v165 = vadd.f32 %v50, %v159
    %v166 = vadd.f32 %v51, %v162
    %167 = vst [vmem:[#allocation2] sm:$0xff] %v165
    %168 = vst [vmem:[#allocation2 + $0x8] sm:$0xff] %v166
    // Predicated region
    $region26: #{tpu_custom_call.1} parent=1 // pred_check
      %p169 = pneg %p44
    $region27: #{tpu_custom_call.1} parent=1 // pred_check_branch
      %171 = sbr.rel (%p169) target = $region29
    $region28: #{tpu_custom_call.1} parent=1 // pred_region
      %v172 = vld [vmem:[#allocation2] sm:$0xff]
      %v173 = vld [vmem:[#allocation2 + $0x8] sm:$0xff]
      %v174 = vld [vmem:[%s2] sm:$0x1]
      %v176 = vlaneseq
      %v177 = vshrl.u32 %v176, 7
      %v178 = vsub.s32 0, %v177
      %v179 = vrot.slane %v174, %v178
      %v181 = vadd.f32 %v172, %v179
      %v182 = vadd.f32 %v173, %v179
      %v183 = vpack.c.bf16 %v182, %v181
      %v185 = vunpack.c.l.b16 %v183
      %v186 = vunpack.c.h.b16 %v183
      %v187 = vpack.c.b16 %v185, %v185
      %v188 = vpack.c.b16 %v186, %v186
      %191 = vst [vmem:[#allocation8] sm:$0xf] %v187
      %192 = vst [vmem:[#allocation8 + $0x4] sm:$0xf] %v188
    $region29: #{tpu_custom_call.1} parent=1 // pred_fallthru
      _
    // Predicated region
    $region30: #{tpu_custom_call.1} parent=1 // pred_check
      _
    $region31: #{tpu_custom_call.1} parent=1 // pred_check_branch
      %194 = sbr.rel (0) target = $region33
    $region32: #{tpu_custom_call.1} parent=1 // pred_region
      %s196 = ssub.s32 128, 128
      %197 = vsyncadd [#allocation5], %s196
      %s198 = sshll.u32 [#allocation8], 4
      %s199 = int_to_ptr.vmem [resolvable:$true] %s198
      %204 = dma.vmem_to_hbm [thread:$0]  %s199, 128, %s3, [#allocation5], 64, 64, 4
    $region33: #{tpu_custom_call.1} parent=1 // pred_fallthru
      _
    // Predicated region
    $region34: #{tpu_custom_call.1} parent=1 // pred_check
      _
    $region35: #{tpu_custom_call.1} parent=1 // pred_check_branch
      %206 = sbr.rel (0) target = $region37
    $region36: #{tpu_custom_call.1} parent=1 // pred_region
      %207 = dma.done [#allocation5], 128
    $region37: #{tpu_custom_call.1} parent=1 // pred_fallthru
      _
    %208 = vsyncpa [#allocation4], 1
    %209 = vsyncpa [#allocation7], 1
    %210 = vsyncpa [#allocation5], 1

</llo_original>
